<compile_context>
chip_gen: v5e
topology: v5e:2x2
jax: 0.10.0
libtpu: 0.0.40
codegen_flags: <defaults>
</compile_context>

<pallas_src>
import jax
import jax.numpy as jnp
from jax.experimental import pallas as pl
from jax.experimental.pallas import tpu as pltpu

_LANE = 128
_SUBLANE = 8
_MAX_TILE_ROWS = 4096  # 4096 rows x 128 lanes = 512K batch elems/block (~12 MiB dbl-buffered VMEM)


def _round_up(n, m):
    return -(-n // m) * m


def mymodel_kernel(params_ref, x_ref, out_ref):
    # params_ref: SMEM f32[6] = [w00, w01, w10, w11, b0, b1]  (torch W is [out, in])
    w00 = params_ref[0]
    w01 = params_ref[1]
    w10 = params_ref[2]
    w11 = params_ref[3]
    b0 = params_ref[4]
    b1 = params_ref[5]

    x0 = x_ref[0]  # (tile_rows, 128) -- dense sublane+lane layout
    x1 = x_ref[1]

    # Linear(2,2): y = x @ W.T + b as broadcast VPU FMAs (no MXU).
    y0 = w00 * x0 + w01 * x1 + b0
    y1 = w10 * x0 + w11 * x1 + b1

    # RX(theta) is unitary and Z == identity, so <sv|Z|sv> = y0^2 + y1^2 exactly;
    # theta and the (unused) torch.norm normalization drop out of the forward value.
    out_ref[...] = y0 * y0 + y1 * y1


def mymodel_forward(x, w, b, theta):
    """MyModel.forward. x: (B,2), w: (2,2) torch-style [out,in], b: (2,), theta: (1,).

    Returns (B, 1) float32. theta is accepted for interface parity but does not change the
    forward value (RX unitary, Z == identity); this is asserted against the full reference."""
    del theta  # algebraically irrelevant to the forward output (validated in __main__)
    x = jnp.asarray(x, jnp.float32)
    B = x.shape[0]
    params = jnp.concatenate(
        [jnp.asarray(w, jnp.float32).reshape(-1),
         jnp.asarray(b, jnp.float32).reshape(-1)])  # (6,) -> SMEM scalars

    # Row/tile sizing: batch mapped onto (rows, 128) = (sublanes*..., lanes).
    rows = _round_up(max(-(-B // _LANE), 1), _SUBLANE)
    if rows > _SUBLANE:
        # >= 2 blocks whenever there is more than one 8x128 tile, so the "parallel" grid axis
        # actually lands on both of v7x's TensorCores; cap block size for VMEM.
        tile_rows = min(_MAX_TILE_ROWS, _round_up(-(-rows // 2), _SUBLANE))
    else:
        tile_rows = rows
    rows = _round_up(rows, tile_rows)
    b_pad = rows * _LANE

    # Single fused relayout pass: pad -> (free) reshape -> transpose; XLA fuses the pad into the
    # transpose copy, so x is read+written once before the kernel (no separate zeros+scatter).
    # TODO(synk): ideally the upstream producer emits x already as (2, rows, 128) planes.
    x_t = (jnp.pad(x, ((0, b_pad - B), (0, 0)))
           .reshape(rows, _LANE, 2)
           .transpose(2, 0, 1))  # (2, rows, 128), dense deinterleaved planes

    out = pl.pallas_call(
        mymodel_kernel,
        out_shape=jax.ShapeDtypeStruct((rows, _LANE), jnp.float32),
        grid=(rows // tile_rows,),
        in_specs=[
            pl.BlockSpec(memory_space=pltpu.MemorySpace.SMEM),         # params (6,), whole array
            pl.BlockSpec((2, tile_rows, _LANE), lambda i: (0, i, 0)),  # x planes, dense blocks
        ],
        out_specs=pl.BlockSpec((tile_rows, _LANE), lambda i: (i, 0)),  # dense unmasked stores
        compiler_params=pltpu.CompilerParams(
            dimension_semantics=("parallel",),       # batch blocks shard across v7x's 2 TCs
            vmem_limit_bytes=32 * 1024 * 1024,       # explicit; fits v5e/v6e/v7x scoped VMEM
        ),
        cost_estimate=pl.CostEstimate(
            flops=11 * b_pad, transcendentals=0, bytes_accessed=12 * b_pad + 24),
    )(params, x_t)

    # Padded lanes hold b0^2+b1^2; slice them off with a contiguous reshape+slice (no relayout).
    return out.reshape(-1)[:B, None]


def mymodel_reference(x, w, b, theta):
    """Pure-JAX reference following the PyTorch/numpy spec (full RX(theta) path, real arithmetic:
    |sv0|^2 = (c*y0)^2 + (s*y1)^2, |sv1|^2 = (s*y0)^2 + (c*y1)^2, Z == identity)."""
    y = jnp.asarray(x, jnp.float32) @ jnp.asarray(w, jnp.float32).T + jnp.asarray(b, jnp.float32)
    # norm = ||y||; y / norm is computed in the torch forward but never consumed by myrx.
    t = theta[0]
    c = jnp.cos(0.5 * t)
    s = jnp.sin(0.5 * t)
    y0 = y[:, 0:1]
    y1 = y[:, 1:2]
    sv0_sq = (c * y0) ** 2 + (s * y1) ** 2
    sv1_sq = (s * y0) ** 2 + (c * y1) ** 2
    return (sv0_sq + sv1_sq).astype(jnp.float32)


if __name__ == "__main__":
    key = jax.random.PRNGKey(0)
    kx, kw, kb, kt, kx2 = jax.random.split(key, 5)

    # Spec shapes: x = torch.randn(2, 2), Linear(2,2), theta scalar.
    B = 2
    x = jax.random.normal(kx, (B, 2), dtype=jnp.float32)
    bound = 2.0 ** -0.5  # torch Linear(2,2) default init range
    w = jax.random.uniform(kw, (2, 2), minval=-bound, maxval=bound, dtype=jnp.float32)
    b = jax.random.uniform(kb, (2,), minval=-bound, maxval=bound, dtype=jnp.float32)
    theta = jax.random.normal(kt, (1,), dtype=jnp.float32)

    out = jax.block_until_ready(mymodel_forward(x, w, b, theta))
    ref = mymodel_reference(x, w, b, theta)
    assert out.shape == (B, 1), out.shape
    assert jnp.allclose(out, ref, atol=1e-5, rtol=1e-5), (out, ref)

    # Secondary check: exercises padding + multi-block "parallel" grid (still tiny/fast).
    B2 = 2500
    x2 = jax.random.normal(kx2, (B2, 2), dtype=jnp.float32)
    out2 = jax.block_until_ready(mymodel_forward(x2, w, b, theta))
    ref2 = mymodel_reference(x2, w, b, theta)
    assert out2.shape == (B2, 1), out2.shape
    assert jnp.allclose(out2, ref2, atol=1e-4, rtol=1e-4)

    # TODO(synk): backward (parameter-shift rule from MyRxFunction.backward) not implemented; forward-only kernel.
    print("KERNEL_OK")
</pallas_src>

<mosaic_0001>
module attributes {stable_mosaic.version = 11 : i64} {
  func.func @mymodel_kernel(%arg0: i32, %arg1: memref<6xf32, #tpu.memory_space<smem>>, %arg2: memref<2x8x128xf32, #tpu.memory_space<vmem>>, %arg3: memref<8x128xf32, #tpu.memory_space<vmem>>) attributes {dimension_semantics = [#tpu.dimension_semantics<parallel>], iteration_bounds = array<i64: 1>, scalar_prefetch = 0 : i64, scratch_operands = 0 : i64, tpu.core_type = #tpu.core_type<tc>, window_params = [{transform_indices = @transform_0, window_bounds = array<i64: 6>}, {transform_indices = @transform_1, window_bounds = array<i64: 2, 8, 128>}, {transform_indices = @transform_2, window_bounds = array<i64: 8, 128>}]} {
    %c0 = arith.constant 0 : index
    %0 = memref.load %arg1[%c0] : memref<6xf32, #tpu.memory_space<smem>>
    %c1 = arith.constant 1 : index
    %1 = memref.load %arg1[%c1] : memref<6xf32, #tpu.memory_space<smem>>
    %c2 = arith.constant 2 : index
    %2 = memref.load %arg1[%c2] : memref<6xf32, #tpu.memory_space<smem>>
    %c3 = arith.constant 3 : index
    %3 = memref.load %arg1[%c3] : memref<6xf32, #tpu.memory_space<smem>>
    %c4 = arith.constant 4 : index
    %4 = memref.load %arg1[%c4] : memref<6xf32, #tpu.memory_space<smem>>
    %c5 = arith.constant 5 : index
    %5 = memref.load %arg1[%c5] : memref<6xf32, #tpu.memory_space<smem>>
    %c0_0 = arith.constant 0 : index
    %c0_1 = arith.constant 0 : index
    %c0_2 = arith.constant 0 : index
    %6 = vector.load %arg2[%c0_0, %c0_1, %c0_2] : memref<2x8x128xf32, #tpu.memory_space<vmem>>, vector<1x8x128xf32>
    %7 = vector.shape_cast %6 : vector<1x8x128xf32> to vector<8x128xf32>
    %c1_3 = arith.constant 1 : index
    %c0_4 = arith.constant 0 : index
    %c0_5 = arith.constant 0 : index
    %8 = vector.load %arg2[%c1_3, %c0_4, %c0_5] : memref<2x8x128xf32, #tpu.memory_space<vmem>>, vector<1x8x128xf32>
    %9 = vector.shape_cast %8 : vector<1x8x128xf32> to vector<8x128xf32>
    %10 = vector.broadcast %0 : f32 to vector<8x128xf32>
    %11 = arith.mulf %10, %7 : vector<8x128xf32>
    %12 = vector.broadcast %1 : f32 to vector<8x128xf32>
    %13 = arith.mulf %12, %9 : vector<8x128xf32>
    %14 = arith.addf %11, %13 : vector<8x128xf32>
    %15 = vector.broadcast %4 : f32 to vector<8x128xf32>
    %16 = arith.addf %14, %15 : vector<8x128xf32>
    %17 = vector.broadcast %2 : f32 to vector<8x128xf32>
    %18 = arith.mulf %17, %7 : vector<8x128xf32>
    %19 = vector.broadcast %3 : f32 to vector<8x128xf32>
    %20 = arith.mulf %19, %9 : vector<8x128xf32>
    %21 = arith.addf %18, %20 : vector<8x128xf32>
    %22 = vector.broadcast %5 : f32 to vector<8x128xf32>
    %23 = arith.addf %21, %22 : vector<8x128xf32>
    %24 = arith.mulf %16, %16 : vector<8x128xf32>
    %25 = arith.mulf %23, %23 : vector<8x128xf32>
    %26 = arith.addf %24, %25 : vector<8x128xf32>
    %c0_6 = arith.constant 0 : index
    %c0_7 = arith.constant 0 : index
    %27 = vector.load %arg3[%c0_6, %c0_7] : memref<8x128xf32, #tpu.memory_space<vmem>>, vector<8x128xf32>
    tpu.vector_store %arg3[%c0_6, %c0_7], %26 {strides = array<i32>} : memref<8x128xf32, #tpu.memory_space<vmem>>, vector<8x128xf32>,
    return
  }
  func.func @transform_0(%arg0: i32) -> i32 {
    %c0_i32 = arith.constant 0 : i32
    %c0_i32_0 = arith.constant 0 : i32
    return %c0_i32 : i32
  }
  func.func @transform_1(%arg0: i32) -> (i32, i32, i32) {
    %c0_i32 = arith.constant 0 : i32
    %c0_i32_0 = arith.constant 0 : i32
    %c0_i32_1 = arith.constant 0 : i32
    return %c0_i32, %arg0, %c0_i32_0 : i32, i32, i32
  }
  func.func @transform_2(%arg0: i32) -> (i32, i32) {
    %c0_i32 = arith.constant 0 : i32
    %c0_i32_0 = arith.constant 0 : i32
    return %arg0, %c0_i32 : i32, i32
  }
}

</mosaic_0001>

<llo_original>
// kernel: tpu_custom_call.1
$region0: #{tpu_custom_call.1}
  #allocation0 [shape = 'u32[]', space=smem, size = 0x4, offset = 0x4, fixed_abs, tag = 'smem constant byte address 0x4 - core index']
  #allocation1 [shape = 'u32[72,128]{1,0:T(1,128)}', space=vmem, size = 0x9000, scoped, tag = 'internal scratch']
  %s0 = inlined_call_operand.hbm [shape: f32[6], index: 0, kind: input, shape index: {}]
  %s1 = inlined_call_operand.hbm [shape: f32[2,8,128], index: 1, kind: input, shape index: {}]
  %s2 = inlined_call_operand.hbm [shape: f32[8,128], index: 2, kind: output, shape index: {}]
  %s3 = sld [smem:[#allocation0]]
  $region26: #{tpu_custom_call.1} parent=0
    _
  %s5 = ssub.s32 1, %s3
  %s6 = scalar_select 0, %s5, %s3
  $region1: #{tpu_custom_call.1} parent=0
    #allocation2 [shape = 'u8[512]{0}', space=smem, size = 0x200, scoped, tag = 'input window, operand 0, single buffered']
    #allocation3 [shape = 's32[1]{0}', space=sflag, size = 0x4, scoped, tag = 'scoped memory for tpu_custom_call.1']
    #allocation4 [shape = 's32[1]{0}', space=sflag, size = 0x4, scoped, tag = 'scoped memory for tpu_custom_call.1']
    #allocation5 [shape = 's32[1]{0}', space=sflag, size = 0x4, scoped, tag = 'scoped memory for tpu_custom_call.1']
    #allocation6 [shape = 'u8[8192]{0}', space=vmem, size = 0x2000, scoped, tag = 'input window, operand 1, single buffered']
    #allocation7 [shape = 'u8[4096]{0}', space=vmem, size = 0x1000, scoped, tag = 'output window, operand 0, single buffered']
    %7 = vsyncpa [#allocation5], 0
    %8 = vsyncpa [#allocation3], 0
    %9 = vsyncpa [#allocation4], 0
    // Predicated region
    $region2: #{tpu_custom_call.1} parent=1 // pred_check
      _
    $region3: #{tpu_custom_call.1} parent=1 // pred_check_branch
      %11 = sbr.rel (0) target = $region5
    $region4: #{tpu_custom_call.1} parent=1 // pred_region
      %13 = vsyncadd [#allocation5], 0
      %s15 = sshll.u32 %s0, 4
      %s16 = int_to_ptr.hbm [resolvable:$true] %s15
      %18 = dma.hbm_to_smem %s16, 16, [#allocation2], [#allocation5]
    $region5: #{tpu_custom_call.1} parent=1 // pred_fallthru
      _
    // Predicated region
    $region6: #{tpu_custom_call.1} parent=1 // pred_check
      _
    $region7: #{tpu_custom_call.1} parent=1 // pred_check_branch
      %20 = sbr.rel (0) target = $region9
    $region8: #{tpu_custom_call.1} parent=1 // pred_region
      %22 = vsyncadd [#allocation3], 0
      %s23 = sshll.u32 %s1, 4
      %s24 = int_to_ptr.hbm [resolvable:$true] %s23
      %s25 = sshll.u32 [#allocation6], 4
      %s26 = int_to_ptr.vmem [resolvable:$true] %s25
      %31 = dma.hbm_to_vmem [thread:$0]  %s24, 256, %s26, [#allocation3], 128, 128, 8
    $region9: #{tpu_custom_call.1} parent=1 // pred_fallthru
      _
    // Predicated region
    $region10: #{tpu_custom_call.1} parent=1 // pred_check
      _
    $region11: #{tpu_custom_call.1} parent=1 // pred_check_branch
      %33 = sbr.rel (0) target = $region13
    $region12: #{tpu_custom_call.1} parent=1 // pred_region
      %35 = dma.done [#allocation5], 16
    $region13: #{tpu_custom_call.1} parent=1 // pred_fallthru
      _
    // Predicated region
    $region14: #{tpu_custom_call.1} parent=1 // pred_check
      _
    $region15: #{tpu_custom_call.1} parent=1 // pred_check_branch
      %37 = sbr.rel (0) target = $region17
    $region16: #{tpu_custom_call.1} parent=1 // pred_region
      %39 = dma.done [#allocation3], 256
    $region17: #{tpu_custom_call.1} parent=1 // pred_fallthru
      _
    %40 = sfence
    %s41 = sld [smem:[#allocation2]]
    %s42 = sld [smem:[#allocation2 + $0x1]]
    %s43 = sld [smem:[#allocation2 + $0x2]]
    %s44 = sld [smem:[#allocation2 + $0x3]]
    %s45 = sld [smem:[#allocation2 + $0x4]]
    %s46 = sld [smem:[#allocation2 + $0x5]]
    %v47 = vld [vmem:[#allocation6] sm:$0xff]
    %s48 = scalar_lea.vmem [#allocation6], 8
    %v49 = vld [vmem:[%s48] sm:$0xff]
    %v50 = vstv %s41
    %v51 = vmul.f32 %v50, %v47
    %v52 = vstv %s42
    %v53 = vmul.f32 %v52, %v49
    %v54 = vadd.f32 %v51, %v53
    %v55 = vstv %s45
    %v56 = vadd.f32 %v54, %v55
    %v57 = vstv %s43
    %v58 = vmul.f32 %v57, %v47
    %v59 = vstv %s44
    %v60 = vmul.f32 %v59, %v49
    %v61 = vadd.f32 %v58, %v60
    %v62 = vstv %s46
    %v63 = vadd.f32 %v61, %v62
    %v64 = vmul.f32 %v56, %v56
    %v65 = vmul.f32 %v63, %v63
    %v66 = vadd.f32 %v64, %v65
    %67 = vst [vmem:[#allocation7] sm:$0xff] %v66
    // Predicated region
    $region18: #{tpu_custom_call.1} parent=1 // pred_check
      _
    $region19: #{tpu_custom_call.1} parent=1 // pred_check_branch
      %69 = sbr.rel (0) target = $region21
    $region20: #{tpu_custom_call.1} parent=1 // pred_region
      %71 = vsyncadd [#allocation4], 0
      %s73 = sshll.u32 [#allocation7], 4
      %s74 = int_to_ptr.vmem [resolvable:$true] %s73
      %s75 = sshll.u32 %s2, 4
      %s76 = int_to_ptr.hbm [resolvable:$true] %s75
      %78 = dma.vmem_to_hbm [thread:$0]  %s74, 128, %s76, [#allocation4]
    $region21: #{tpu_custom_call.1} parent=1 // pred_fallthru
      _
    // Predicated region
    $region22: #{tpu_custom_call.1} parent=1 // pred_check
      _
    $region23: #{tpu_custom_call.1} parent=1 // pred_check_branch
      %80 = sbr.rel (0) target = $region25
    $region24: #{tpu_custom_call.1} parent=1 // pred_region
      %82 = dma.done [#allocation4], 128
    $region25: #{tpu_custom_call.1} parent=1 // pred_fallthru
      _
    %83 = vsyncpa [#allocation3], 1
    %84 = vsyncpa [#allocation4], 1
    %85 = vsyncpa [#allocation5], 1

</llo_original>
